<compile_context>
chip_gen: v5e
topology: v5e:2x2
jax: 0.10.0
libtpu: 0.0.40
codegen_flags: <defaults>
</compile_context>

<pallas_src>
import jax
import jax.numpy as jnp
from jax.experimental import pallas as pl
from jax.experimental.pallas import tpu as pltpu

EPS = 1e-5                      # BatchNorm2d default eps
_VMEM_LIMIT_BYTES = 48 * 1024 * 1024   # explicit, safe on v5e/v6e (128 MiB) and v7x (64 MiB)


def _round_up(x, m):
    return (x + m - 1) // m * m


def _pick(dim, candidates):
    """Largest candidate tile that divides `dim`; fall back to the full dim."""
    for t in candidates:
        if dim % t == 0:
            return t
    return dim


# ---------------------------------------------------------------------------
# Pallas kernel: tiled matmul (+bias), bf16 inputs on the MXU, f32 accumulator
# ---------------------------------------------------------------------------
def _mm_bias_kernel(a_ref, b_ref, bias_ref, o_ref, acc_ref):
    @pl.when(pl.program_id(2) == 0)
    def _():
        acc_ref[...] = jnp.zeros_like(acc_ref)

    acc_ref[...] += jnp.dot(a_ref[...], b_ref[...],
                            preferred_element_type=jnp.float32)

    @pl.when(pl.program_id(2) == pl.num_programs(2) - 1)
    def _():
        o_ref[...] = (acc_ref[...] + bias_ref[...]).astype(o_ref.dtype)


def pallas_matmul(a, b, bias=None, out_dtype=jnp.float32):
    """a:(M,K) @ b:(K,N) + bias:(N,) -> (M,N) in `out_dtype` (f32 accumulation)."""
    M, K = a.shape
    K2, N = b.shape
    assert K == K2
    a = a.astype(jnp.bfloat16)
    b = b.astype(jnp.bfloat16)
    if bias is None:
        bias = jnp.zeros((N,), jnp.float32)
    bias = bias.astype(jnp.float32)

    # Minimal padding only (bf16 sublane packing / tiny lane dims); the large
    # im2col slabs already satisfy these and are passed through untouched.
    Mp = _round_up(M, 16)
    Kp = _round_up(K, 16)
    Np = _round_up(N, 64)
    if Mp != M or Kp != K:
        a = jnp.pad(a, ((0, Mp - M), (0, Kp - K)))
    if Kp != K or Np != N:
        b = jnp.pad(b, ((0, Kp - K), (0, Np - N)))
    if Np != N:
        bias = jnp.pad(bias, (0, Np - N))
    bias2d = bias.reshape(1, Np)

    tm = _pick(Mp, (512, 256, 128, 64, 32, 16))   # always found (Mp % 16 == 0)
    tn = _pick(Np, (256, 128))                    # falls back to full Np (e.g. 64)
    tk = _pick(Kp, (512, 256, 128))               # falls back to full Kp (e.g. 16, 576)

    grid = (Mp // tm, Np // tn, Kp // tk)

    out = pl.pallas_call(
        _mm_bias_kernel,
        out_shape=jax.ShapeDtypeStruct((Mp, Np), out_dtype),
        grid_spec=pltpu.PrefetchScalarGridSpec(
            num_scalar_prefetch=0,
            grid=grid,
            in_specs=[
                pl.BlockSpec((tm, tk), lambda i, j, k: (i, k)),
                pl.BlockSpec((tk, tn), lambda i, j, k: (k, j)),
                pl.BlockSpec((1, tn), lambda i, j, k: (0, j)),
            ],
            out_specs=pl.BlockSpec((tm, tn), lambda i, j, k: (i, j)),
            scratch_shapes=[pltpu.VMEM((tm, tn), jnp.float32)],
        ),
        compiler_params=pltpu.CompilerParams(
            dimension_semantics=("parallel", "parallel", "arbitrary"),
            vmem_limit_bytes=_VMEM_LIMIT_BYTES),
    )(a, b, bias2d)

    if Mp != M or Np != N:
        out = out[:M, :N]
    return out


# ---------------------------------------------------------------------------
# Pallas kernels: BatchNorm (batch statistics) + ReLU, tiled two-pass
# ---------------------------------------------------------------------------
def _bn_stats_kernel(x_ref, s_ref, q_ref):
    @pl.when(pl.program_id(0) == 0)
    def _():
        s_ref[...] = jnp.zeros_like(s_ref)
        q_ref[...] = jnp.zeros_like(q_ref)
    x = x_ref[...]
    s_ref[...] += jnp.sum(x, axis=0, keepdims=True)
    q_ref[...] += jnp.sum(x * x, axis=0, keepdims=True)


def _affine_relu_kernel(x_ref, sc_ref, sh_ref, o_ref):
    y = x_ref[...] * sc_ref[...] + sh_ref[...]          # f32 math (v5e-safe)
    o_ref[...] = jnp.maximum(y, 0.0).astype(o_ref.dtype)


def pallas_bn_relu(x2d, gamma, beta):
    """x2d:(M,C) f32 -> bf16 (M,C); BN uses per-call batch stats (torch train())."""
    M, C = x2d.shape
    t = _pick(M, (512, 256, 128, 64, 32, 16))
    grid = (M // t,)

    s, q = pl.pallas_call(
        _bn_stats_kernel,
        out_shape=(jax.ShapeDtypeStruct((1, C), jnp.float32),
                   jax.ShapeDtypeStruct((1, C), jnp.float32)),
        grid_spec=pltpu.PrefetchScalarGridSpec(
            num_scalar_prefetch=0,
            grid=grid,
            in_specs=[pl.BlockSpec((t, C), lambda i: (i, 0))],
            out_specs=[pl.BlockSpec((1, C), lambda i: (0, 0)),
                       pl.BlockSpec((1, C), lambda i: (0, 0))],
        ),
        compiler_params=pltpu.CompilerParams(
            dimension_semantics=("arbitrary",)),
    )(x2d)

    inv_m = 1.0 / M
    mean = s * inv_m
    var = jnp.maximum(q * inv_m - mean * mean, 0.0)      # biased var (training BN)
    scale = gamma.reshape(1, C).astype(jnp.float32) * jax.lax.rsqrt(var + EPS)
    shift = beta.reshape(1, C).astype(jnp.float32) - mean * scale

    out = pl.pallas_call(
        _affine_relu_kernel,
        out_shape=jax.ShapeDtypeStruct((M, C), jnp.bfloat16),
        grid_spec=pltpu.PrefetchScalarGridSpec(
            num_scalar_prefetch=0,
            grid=grid,
            in_specs=[pl.BlockSpec((t, C), lambda i: (i, 0)),
                      pl.BlockSpec((1, C), lambda i: (0, 0)),
                      pl.BlockSpec((1, C), lambda i: (0, 0))],
            out_specs=pl.BlockSpec((t, C), lambda i: (i, 0)),
        ),
        compiler_params=pltpu.CompilerParams(
            dimension_semantics=("parallel",)),
    )(x2d, scale, shift)
    return out


# ---------------------------------------------------------------------------
# Pallas kernel: MaxPool2d(2,2), tiled elementwise max of the 4 window taps
# ---------------------------------------------------------------------------
def _max4_kernel(a_ref, b_ref, c_ref, d_ref, o_ref):
    o_ref[...] = jnp.maximum(jnp.maximum(a_ref[...], b_ref[...]),
                             jnp.maximum(c_ref[...], d_ref[...]))


def pallas_maxpool2x2(x):
    N, H, W, C = x.shape
    H2, W2 = (H // 2) * 2, (W // 2) * 2       # floor behaviour, like torch
    x = x[:, :H2, :W2, :]
    # TODO(synk): fold the 4 strided views into a single halo-tiled Pallas
    # kernel reading the NHWC tensor once (avoids materializing the views).
    a = x[:, 0::2, 0::2, :].reshape(-1, C)
    b = x[:, 0::2, 1::2, :].reshape(-1, C)
    c = x[:, 1::2, 0::2, :].reshape(-1, C)
    d = x[:, 1::2, 1::2, :].reshape(-1, C)
    M = a.shape[0]
    t = _pick(M, (512, 256, 128, 64, 32, 16))
    spec = pl.BlockSpec((t, C), lambda i: (i, 0))
    out = pl.pallas_call(
        _max4_kernel,
        out_shape=jax.ShapeDtypeStruct((M, C), x.dtype),
        grid_spec=pltpu.PrefetchScalarGridSpec(
            num_scalar_prefetch=0,
            grid=(M // t,),
            in_specs=[spec, spec, spec, spec],
            out_specs=spec,
        ),
        compiler_params=pltpu.CompilerParams(
            dimension_semantics=("parallel",)),
    )(a, b, c, d)
    return out.reshape(N, H2 // 2, W2 // 2, C)


# ---------------------------------------------------------------------------
# Layer helpers (im2col / reshapes are JAX glue; matmul/BN/pool are Pallas)
# ---------------------------------------------------------------------------
def conv3x3(xs, w):
    """3x3 conv, padding=1, no bias.  xs: list of NHWC inputs whose channels
    are logically concatenated (folds the decoder skip-concat into im2col).
    w: (Cout, Cin_total, 3, 3) torch layout.  Returns ((M, Cout) f32, (N,H,W))."""
    N, H, W, _ = xs[0].shape
    cin_total = w.shape[1]
    Cout = w.shape[0]
    # TODO(synk): replace the materialized im2col slab with a halo-blocked
    # direct-conv Pallas kernel (9 accumulated taps) to cut HBM traffic ~9x.
    xps = [jnp.pad(x.astype(jnp.bfloat16), ((0, 0), (1, 1), (1, 1), (0, 0)))
           for x in xs]
    pats = []
    for di in range(3):
        for dj in range(3):
            for xp in xps:
                pats.append(xp[:, di:di + H, dj:dj + W, :])
    a = jnp.concatenate(pats, axis=-1).reshape(N * H * W, 9 * cin_total)
    w_mat = jnp.transpose(w, (2, 3, 1, 0)).reshape(9 * cin_total, Cout)
    y = pallas_matmul(a, w_mat)                          # f32 (M, Cout)
    return y, (N, H, W)


def double_conv(xs, params):
    """params: list of two (conv_w, bn_gamma, bn_beta).  Returns NHWC bf16."""
    for (w, g, b) in params:
        y2d, (N, H, W) = conv3x3(xs, w)
        Cout = y2d.shape[1]
        a2d = pallas_bn_relu(y2d, g, b)                  # bf16
        xs = [a2d.reshape(N, H, W, Cout)]
    return xs[0]


def conv_transpose2x2(x, w, bias):
    """x:(N,H,W,Cin), w:(Cin,Cout,2,2) torch layout, stride=2, with bias."""
    N, H, W, Cin = x.shape
    Cout = w.shape[1]
    w_mat = jnp.transpose(w, (0, 2, 3, 1)).reshape(Cin, 4 * Cout)  # cols (ki,kj,co)
    bias_cols = jnp.tile(bias, 4)
    y = pallas_matmul(x.reshape(N * H * W, Cin), w_mat, bias_cols,
                      out_dtype=jnp.bfloat16)
    y = y.reshape(N, H, W, 2, 2, Cout)
    # TODO(synk): scatter the four (ki,kj) taps directly via output BlockSpecs
    # instead of this pixel-shuffle transpose pass.
    y = jnp.transpose(y, (0, 1, 3, 2, 4, 5)).reshape(N, 2 * H, 2 * W, Cout)
    return y


def conv1x1(x, w, bias):
    """x:(N,H,W,Cin), w:(Cout,Cin,1,1) torch layout, with bias."""
    N, H, W, Cin = x.shape
    Cout = w.shape[0]
    y = pallas_matmul(x.reshape(-1, Cin), w.reshape(Cout, Cin).T, bias)
    return y.reshape(N, H, W, Cout)


# ---------------------------------------------------------------------------
# UNet forward
# ---------------------------------------------------------------------------
def unet_forward(x, params):
    skips = []
    for dp in params["downs"]:
        x = double_conv([x], dp)
        skips.append(x)
        x = pallas_maxpool2x2(x)
    x = double_conv([x], params["bottleneck"])
    for i in range(4):
        wt, bt = params["up_t"][i]
        x = conv_transpose2x2(x, wt, bt)
        skip = skips.pop()                               # deque.pop(): most recent
        x = double_conv([skip, x], params["up_dc"][i])   # torch.cat((skip,x),1) folded in
    fw, fb = params["final"]
    return conv1x1(x, fw, fb)


# ---------------------------------------------------------------------------
# Deterministic parameter initialization (matches module's shapes)
# ---------------------------------------------------------------------------
def init_params(key, in_channels=1, out_channels=2):
    keys = iter(jax.random.split(key, 64))

    def rnd(shape, scale=0.05):
        return jax.random.normal(next(keys), shape, jnp.float32) * scale

    def dc(cin, cout):
        return [
            (rnd((cout, cin, 3, 3)), jnp.ones((cout,), jnp.float32), jnp.zeros((cout,), jnp.float32)),
            (rnd((cout, cout, 3, 3)), jnp.ones((cout,), jnp.float32), jnp.zeros((cout,), jnp.float32)),
        ]

    feats = [64, 128, 256, 512]
    downs = []
    c = in_channels
    for f in feats:
        downs.append(dc(c, f))
        c = f
    bottleneck = dc(512, 1024)

    up_t, up_dc = [], []
    ch = 1024
    for f in reversed(feats):                  # 512, 256, 128, 64
        up_t.append((rnd((ch, f, 2, 2)), rnd((f,))))   # ConvTranspose2d weight/bias
        up_dc.append(dc(2 * f, f))
        ch = f

    final = (rnd((out_channels, 64, 1, 1)), rnd((out_channels,)))
    return {"downs": downs, "bottleneck": bottleneck,
            "up_t": up_t, "up_dc": up_dc, "final": final}


if __name__ == "__main__":
    key = jax.random.PRNGKey(0)
    kp, kx = jax.random.split(key)
    params = init_params(kp, in_channels=1, out_channels=2)

    # Small input consistent with UNet(in_channels=1): NCHW (2, 1, 16, 16)
    x_nchw = jax.random.normal(kx, (2, 1, 16, 16), jnp.float32)
    x_nhwc = jnp.transpose(x_nchw, (0, 2, 3, 1))

    out_nhwc = unet_forward(x_nhwc, params)
    out_nchw = jnp.transpose(out_nhwc, (0, 3, 1, 2))
    jax.block_until_ready(out_nchw)

    assert out_nchw.shape == (2, 2, 16, 16), out_nchw.shape
    assert bool(jnp.all(jnp.isfinite(out_nchw)))
    print("KERNEL_OK")
</pallas_src>

<mosaic_0001>
module attributes {stable_mosaic.version = 11 : i64} {
  func.func @_mm_bias_kernel(%arg0: i32, %arg1: i32, %arg2: i32, %arg3: memref<512x16xbf16, #tpu.memory_space<vmem>>, %arg4: memref<16x64xbf16, #tpu.memory_space<vmem>>, %arg5: memref<1x64xf32, #tpu.memory_space<vmem>>, %arg6: memref<512x64xf32, #tpu.memory_space<vmem>>, %arg7: memref<512x64xf32, #tpu.memory_space<vmem>>) attributes {dimension_semantics = [#tpu.dimension_semantics<parallel>, #tpu.dimension_semantics<parallel>, #tpu.dimension_semantics<arbitrary>], iteration_bounds = array<i64: 1, 1, 1>, scalar_prefetch = 0 : i64, scratch_operands = 1 : i64, tpu.core_type = #tpu.core_type<tc>, window_params = [{transform_indices = @transform_0, window_bounds = array<i64: 512, 16>}, {transform_indices = @transform_1, window_bounds = array<i64: 16, 64>}, {transform_indices = @transform_2, window_bounds = array<i64: 1, 64>}, {transform_indices = @transform_3, window_bounds = array<i64: 512, 64>}]} {
    %c0_i32 = arith.constant 0 : i32
    %0 = arith.cmpi eq, %arg2, %c0_i32 : i32
    %1 = arith.extui %0 : i1 to i32
    %c0_i32_0 = arith.constant 0 : i32
    %2 = arith.cmpi ne, %1, %c0_i32_0 : i32
    scf.if %2 {
      %cst_10 = arith.constant 0.000000e+00 : f32
      %12 = vector.broadcast %cst_10 : f32 to vector<512x64xf32>
      %c0_11 = arith.constant 0 : index
      %c0_12 = arith.constant 0 : index
      %13 = vector.load %arg7[%c0_11, %c0_12] : memref<512x64xf32, #tpu.memory_space<vmem>>, vector<512x64xf32>
      tpu.vector_store %arg7[%c0_11, %c0_12], %12 {strides = array<i32>} : memref<512x64xf32, #tpu.memory_space<vmem>>, vector<512x64xf32>,
    } else {
    }
    %c0 = arith.constant 0 : index
    %c0_1 = arith.constant 0 : index
    %3 = vector.load %arg7[%c0, %c0_1] : memref<512x64xf32, #tpu.memory_space<vmem>>, vector<512x64xf32>
    %c0_2 = arith.constant 0 : index
    %c0_3 = arith.constant 0 : index
    %4 = vector.load %arg3[%c0_2, %c0_3] : memref<512x16xbf16, #tpu.memory_space<vmem>>, vector<512x16xbf16>
    %c0_4 = arith.constant 0 : index
    %c0_5 = arith.constant 0 : index
    %5 = vector.load %arg4[%c0_4, %c0_5] : memref<16x64xbf16, #tpu.memory_space<vmem>>, vector<16x64xbf16>
    %cst = arith.constant dense<0.000000e+00> : vector<512x64xf32>
    %6 = tpu.matmul %4, %5, %cst {dimension_numbers = #tpu.dot_dimension_numbers<[1], [0], [0], [1], [0, 0, 1, 1], [], []>} : vector<512x16xbf16>, vector<16x64xbf16>, vector<512x64xf32> -> vector<512x64xf32>
    %7 = arith.addf %3, %6 : vector<512x64xf32>
    %c0_6 = arith.constant 0 : index
    %c0_7 = arith.constant 0 : index
    %8 = vector.load %arg7[%c0_6, %c0_7] : memref<512x64xf32, #tpu.memory_space<vmem>>, vector<512x64xf32>
    tpu.vector_store %arg7[%c0_6, %c0_7], %7 {strides = array<i32>} : memref<512x64xf32, #tpu.memory_space<vmem>>, vector<512x64xf32>,
    %c0_i32_8 = arith.constant 0 : i32
    %9 = arith.cmpi eq, %arg2, %c0_i32_8 : i32
    %10 = arith.extui %9 : i1 to i32
    %c0_i32_9 = arith.constant 0 : i32
    %11 = arith.cmpi ne, %10, %c0_i32_9 : i32
    scf.if %11 {
      %c0_10 = arith.constant 0 : index
      %c0_11 = arith.constant 0 : index
      %12 = vector.load %arg7[%c0_10, %c0_11] : memref<512x64xf32, #tpu.memory_space<vmem>>, vector<512x64xf32>
      %c0_12 = arith.constant 0 : index
      %c0_13 = arith.constant 0 : index
      %13 = vector.load %arg5[%c0_12, %c0_13] : memref<1x64xf32, #tpu.memory_space<vmem>>, vector<1x64xf32>
      %14 = vector.broadcast %13 : vector<1x64xf32> to vector<512x64xf32>
      %15 = arith.addf %12, %14 : vector<512x64xf32>
      %c0_14 = arith.constant 0 : index
      %c0_15 = arith.constant 0 : index
      %16 = vector.load %arg6[%c0_14, %c0_15] : memref<512x64xf32, #tpu.memory_space<vmem>>, vector<512x64xf32>
      tpu.vector_store %arg6[%c0_14, %c0_15], %15 {strides = array<i32>} : memref<512x64xf32, #tpu.memory_space<vmem>>, vector<512x64xf32>,
    } else {
    }
    return
  }
  func.func @transform_0(%arg0: i32, %arg1: i32, %arg2: i32) -> (i32, i32) {
    %c0_i32 = arith.constant 0 : i32
    return %arg0, %arg2 : i32, i32
  }
  func.func @transform_1(%arg0: i32, %arg1: i32, %arg2: i32) -> (i32, i32) {
    %c0_i32 = arith.constant 0 : i32
    return %arg2, %arg1 : i32, i32
  }
  func.func @transform_2(%arg0: i32, %arg1: i32, %arg2: i32) -> (i32, i32) {
    %c0_i32 = arith.constant 0 : i32
    %c0_i32_0 = arith.constant 0 : i32
    return %c0_i32, %arg1 : i32, i32
  }
  func.func @transform_3(%arg0: i32, %arg1: i32, %arg2: i32) -> (i32, i32) {
    %c0_i32 = arith.constant 0 : i32
    return %arg0, %arg1 : i32, i32
  }
}

</mosaic_0001>

<llo_original>
// kernel: tpu_custom_call.1
$region0: #{tpu_custom_call.1}
  #allocation0 [shape = 'u32[]', space=smem, size = 0x4, offset = 0x4, fixed_abs, tag = 'smem constant byte address 0x4 - core index']
  #allocation1 [shape = 'u32[72,128]{1,0:T(1,128)}', space=vmem, size = 0x9000, scoped, tag = 'internal scratch']
  #allocation2 [shape = 'f32[512,64]{1,0:T(8,128)}', space=vmem, size = 0x40000, scoped, tag = 'scratch operand']
  %s0 = inlined_call_operand.vmem [shape: bf16[512,16], index: 0, kind: input, shape index: {}]
  %s1 = inlined_call_operand.vmem [shape: bf16[16,64], index: 1, kind: input, shape index: {}]
  %s2 = inlined_call_operand.vmem [shape: f32[1,64], index: 2, kind: input, shape index: {}]
  %s3 = inlined_call_operand.vmem [shape: f32[512,64], index: 3, kind: output, shape index: {}]
  %s4 = sld [smem:[#allocation0]]
  $region30: #{tpu_custom_call.1} parent=0
    _
  %s6 = ssub.s32 1, %s4
  %s7 = scalar_select 0, %s6, %s4
  // Predicated region
  $region2: #{tpu_custom_call.1} parent=0 // pred_check
    _
  $region3: #{tpu_custom_call.1} parent=0 // pred_check_branch
    %9 = sbr.rel (0) target = $region5
  $region4: #{tpu_custom_call.1} parent=0 // pred_region
    _
  $region5: #{tpu_custom_call.1} parent=0 // pred_fallthru
    _
  // Predicated region
  $region6: #{tpu_custom_call.1} parent=0 // pred_check
    _
  $region7: #{tpu_custom_call.1} parent=0 // pred_check_branch
    %11 = sbr.rel (0) target = $region9
  $region8: #{tpu_custom_call.1} parent=0 // pred_region
    _
  $region9: #{tpu_custom_call.1} parent=0 // pred_fallthru
    _
  // Predicated region
  $region10: #{tpu_custom_call.1} parent=0 // pred_check
    _
  $region11: #{tpu_custom_call.1} parent=0 // pred_check_branch
    %13 = sbr.rel (0) target = $region13
  $region12: #{tpu_custom_call.1} parent=0 // pred_region
    _
  $region13: #{tpu_custom_call.1} parent=0 // pred_fallthru
    _
  %p15 = scmp.eq.s32.totalorder 0, 0
  // Predicated region
  $region14: #{tpu_custom_call.1} parent=0 // pred_check
    %p16 = pneg %p15
  $region15: #{tpu_custom_call.1} parent=0 // pred_check_branch
    %18 = sbr.rel (%p16) target = $region17
  $region16: #{tpu_custom_call.1} parent=0 // pred_region
    %vm19 = vcmask 523264
    %20 = vst.msk [vmem:[#allocation2] sm:$0xff] %vm19, 0.0
    %21 = vst.msk [vmem:[#allocation2 + $0x8] sm:$0xff] %vm19, 0.0
    %22 = vst.msk [vmem:[#allocation2 + $0x10] sm:$0xff] %vm19, 0.0
    %23 = vst.msk [vmem:[#allocation2 + $0x18] sm:$0xff] %vm19, 0.0
    %24 = vst.msk [vmem:[#allocation2 + $0x20] sm:$0xff] %vm19, 0.0
    %25 = vst.msk [vmem:[#allocation2 + $0x28] sm:$0xff] %vm19, 0.0
    %26 = vst.msk [vmem:[#allocation2 + $0x30] sm:$0xff] %vm19, 0.0
    %27 = vst.msk [vmem:[#allocation2 + $0x38] sm:$0xff] %vm19, 0.0
    %28 = vst.msk [vmem:[#allocation2 + $0x40] sm:$0xff] %vm19, 0.0
    %29 = vst.msk [vmem:[#allocation2 + $0x48] sm:$0xff] %vm19, 0.0
    %30 = vst.msk [vmem:[#allocation2 + $0x50] sm:$0xff] %vm19, 0.0
    %31 = vst.msk [vmem:[#allocation2 + $0x58] sm:$0xff] %vm19, 0.0
    %32 = vst.msk [vmem:[#allocation2 + $0x60] sm:$0xff] %vm19, 0.0
    %33 = vst.msk [vmem:[#allocation2 + $0x68] sm:$0xff] %vm19, 0.0
    %34 = vst.msk [vmem:[#allocation2 + $0x70] sm:$0xff] %vm19, 0.0
    %35 = vst.msk [vmem:[#allocation2 + $0x78] sm:$0xff] %vm19, 0.0
    %36 = vst.msk [vmem:[#allocation2 + $0x80] sm:$0xff] %vm19, 0.0
    %37 = vst.msk [vmem:[#allocation2 + $0x88] sm:$0xff] %vm19, 0.0
    %38 = vst.msk [vmem:[#allocation2 + $0x90] sm:$0xff] %vm19, 0.0
    %39 = vst.msk [vmem:[#allocation2 + $0x98] sm:$0xff] %vm19, 0.0
    %40 = vst.msk [vmem:[#allocation2 + $0xa0] sm:$0xff] %vm19, 0.0
    %41 = vst.msk [vmem:[#allocation2 + $0xa8] sm:$0xff] %vm19, 0.0
    %42 = vst.msk [vmem:[#allocation2 + $0xb0] sm:$0xff] %vm19, 0.0
    %43 = vst.msk [vmem:[#allocation2 + $0xb8] sm:$0xff] %vm19, 0.0
    %44 = vst.msk [vmem:[#allocation2 + $0xc0] sm:$0xff] %vm19, 0.0
    %45 = vst.msk [vmem:[#allocation2 + $0xc8] sm:$0xff] %vm19, 0.0
    %46 = vst.msk [vmem:[#allocation2 + $0xd0] sm:$0xff] %vm19, 0.0
    %47 = vst.msk [vmem:[#allocation2 + $0xd8] sm:$0xff] %vm19, 0.0
    %48 = vst.msk [vmem:[#allocation2 + $0xe0] sm:$0xff] %vm19, 0.0
    %49 = vst.msk [vmem:[#allocation2 + $0xe8] sm:$0xff] %vm19, 0.0
    %50 = vst.msk [vmem:[#allocation2 + $0xf0] sm:$0xff] %vm19, 0.0
    %51 = vst.msk [vmem:[#allocation2 + $0xf8] sm:$0xff] %vm19, 0.0
    %52 = vst.msk [vmem:[#allocation2 + $0x100] sm:$0xff] %vm19, 0.0
    %53 = vst.msk [vmem:[#allocation2 + $0x108] sm:$0xff] %vm19, 0.0
    %54 = vst.msk [vmem:[#allocation2 + $0x110] sm:$0xff] %vm19, 0.0
    %55 = vst.msk [vmem:[#allocation2 + $0x118] sm:$0xff] %vm19, 0.0
    %56 = vst.msk [vmem:[#allocation2 + $0x120] sm:$0xff] %vm19, 0.0
    %57 = vst.msk [vmem:[#allocation2 + $0x128] sm:$0xff] %vm19, 0.0
    %58 = vst.msk [vmem:[#allocation2 + $0x130] sm:$0xff] %vm19, 0.0
    %59 = vst.msk [vmem:[#allocation2 + $0x138] sm:$0xff] %vm19, 0.0
    %60 = vst.msk [vmem:[#allocation2 + $0x140] sm:$0xff] %vm19, 0.0
    %61 = vst.msk [vmem:[#allocation2 + $0x148] sm:$0xff] %vm19, 0.0
    %62 = vst.msk [vmem:[#allocation2 + $0x150] sm:$0xff] %vm19, 0.0
    %63 = vst.msk [vmem:[#allocation2 + $0x158] sm:$0xff] %vm19, 0.0
    %64 = vst.msk [vmem:[#allocation2 + $0x160] sm:$0xff] %vm19, 0.0
    %65 = vst.msk [vmem:[#allocation2 + $0x168] sm:$0xff] %vm19, 0.0
    %66 = vst.msk [vmem:[#allocation2 + $0x170] sm:$0xff] %vm19, 0.0
    %67 = vst.msk [vmem:[#allocation2 + $0x178] sm:$0xff] %vm19, 0.0
    %68 = vst.msk [vmem:[#allocation2 + $0x180] sm:$0xff] %vm19, 0.0
    %69 = vst.msk [vmem:[#allocation2 + $0x188] sm:$0xff] %vm19, 0.0
    %70 = vst.msk [vmem:[#allocation2 + $0x190] sm:$0xff] %vm19, 0.0
    %71 = vst.msk [vmem:[#allocation2 + $0x198] sm:$0xff] %vm19, 0.0
    %72 = vst.msk [vmem:[#allocation2 + $0x1a0] sm:$0xff] %vm19, 0.0
    %73 = vst.msk [vmem:[#allocation2 + $0x1a8] sm:$0xff] %vm19, 0.0
    %74 = vst.msk [vmem:[#allocation2 + $0x1b0] sm:$0xff] %vm19, 0.0
    %75 = vst.msk [vmem:[#allocation2 + $0x1b8] sm:$0xff] %vm19, 0.0
    %76 = vst.msk [vmem:[#allocation2 + $0x1c0] sm:$0xff] %vm19, 0.0
    %77 = vst.msk [vmem:[#allocation2 + $0x1c8] sm:$0xff] %vm19, 0.0
    %78 = vst.msk [vmem:[#allocation2 + $0x1d0] sm:$0xff] %vm19, 0.0
    %79 = vst.msk [vmem:[#allocation2 + $0x1d8] sm:$0xff] %vm19, 0.0
    %80 = vst.msk [vmem:[#allocation2 + $0x1e0] sm:$0xff] %vm19, 0.0
    %81 = vst.msk [vmem:[#allocation2 + $0x1e8] sm:$0xff] %vm19, 0.0
    %82 = vst.msk [vmem:[#allocation2 + $0x1f0] sm:$0xff] %vm19, 0.0
    %83 = vst.msk [vmem:[#allocation2 + $0x1f8] sm:$0xff] %vm19, 0.0
  $region17: #{tpu_custom_call.1} parent=0 // pred_fallthru
    _
  %v84 = vld [vmem:[#allocation2] sm:$0xff]
  %v85 = vld [vmem:[#allocation2 + $0x8] sm:$0xff]
  %v86 = vld [vmem:[#allocation2 + $0x10] sm:$0xff]
  %v87 = vld [vmem:[#allocation2 + $0x18] sm:$0xff]
  %v88 = vld [vmem:[#allocation2 + $0x20] sm:$0xff]
  %v89 = vld [vmem:[#allocation2 + $0x28] sm:$0xff]
  %v90 = vld [vmem:[#allocation2 + $0x30] sm:$0xff]
  %v91 = vld [vmem:[#allocation2 + $0x38] sm:$0xff]
  %v92 = vld [vmem:[#allocation2 + $0x40] sm:$0xff]
  %v93 = vld [vmem:[#allocation2 + $0x48] sm:$0xff]
  %v94 = vld [vmem:[#allocation2 + $0x50] sm:$0xff]
  %v95 = vld [vmem:[#allocation2 + $0x58] sm:$0xff]
  %v96 = vld [vmem:[#allocation2 + $0x60] sm:$0xff]
  %v97 = vld [vmem:[#allocation2 + $0x68] sm:$0xff]
  %v98 = vld [vmem:[#allocation2 + $0x70] sm:$0xff]
  %v99 = vld [vmem:[#allocation2 + $0x78] sm:$0xff]
  %v100 = vld [vmem:[#allocation2 + $0x80] sm:$0xff]
  %v101 = vld [vmem:[#allocation2 + $0x88] sm:$0xff]
  %v102 = vld [vmem:[#allocation2 + $0x90] sm:$0xff]
  %v103 = vld [vmem:[#allocation2 + $0x98] sm:$0xff]
  %v104 = vld [vmem:[#allocation2 + $0xa0] sm:$0xff]
  %v105 = vld [vmem:[#allocation2 + $0xa8] sm:$0xff]
  %v106 = vld [vmem:[#allocation2 + $0xb0] sm:$0xff]
  %v107 = vld [vmem:[#allocation2 + $0xb8] sm:$0xff]
  %v108 = vld [vmem:[#allocation2 + $0xc0] sm:$0xff]
  %v109 = vld [vmem:[#allocation2 + $0xc8] sm:$0xff]
  %v110 = vld [vmem:[#allocation2 + $0xd0] sm:$0xff]
  %v111 = vld [vmem:[#allocation2 + $0xd8] sm:$0xff]
  %v112 = vld [vmem:[#allocation2 + $0xe0] sm:$0xff]
  %v113 = vld [vmem:[#allocation2 + $0xe8] sm:$0xff]
  %v114 = vld [vmem:[#allocation2 + $0xf0] sm:$0xff]
  %v115 = vld [vmem:[#allocation2 + $0xf8] sm:$0xff]
  %v116 = vld [vmem:[#allocation2 + $0x100] sm:$0xff]
  %v117 = vld [vmem:[#allocation2 + $0x108] sm:$0xff]
  %v118 = vld [vmem:[#allocation2 + $0x110] sm:$0xff]
  %v119 = vld [vmem:[#allocation2 + $0x118] sm:$0xff]
  %v120 = vld [vmem:[#allocation2 + $0x120] sm:$0xff]
  %v121 = vld [vmem:[#allocation2 + $0x128] sm:$0xff]
  %v122 = vld [vmem:[#allocation2 + $0x130] sm:$0xff]
  %v123 = vld [vmem:[#allocation2 + $0x138] sm:$0xff]
  %v124 = vld [vmem:[#allocation2 + $0x140] sm:$0xff]
  %v125 = vld [vmem:[#allocation2 + $0x148] sm:$0xff]
  %v126 = vld [vmem:[#allocation2 + $0x150] sm:$0xff]
  %v127 = vld [vmem:[#allocation2 + $0x158] sm:$0xff]
  %v128 = vld [vmem:[#allocation2 + $0x160] sm:$0xff]
  %v129 = vld [vmem:[#allocation2 + $0x168] sm:$0xff]
  %v130 = vld [vmem:[#allocation2 + $0x170] sm:$0xff]
  %v131 = vld [vmem:[#allocation2 + $0x178] sm:$0xff]
  %v132 = vld [vmem:[#allocation2 + $0x180] sm:$0xff]
  %v133 = vld [vmem:[#allocation2 + $0x188] sm:$0xff]
  %v134 = vld [vmem:[#allocation2 + $0x190] sm:$0xff]
  %v135 = vld [vmem:[#allocation2 + $0x198] sm:$0xff]
  %v136 = vld [vmem:[#allocation2 + $0x1a0] sm:$0xff]
  %v137 = vld [vmem:[#allocation2 + $0x1a8] sm:$0xff]
  %v138 = vld [vmem:[#allocation2 + $0x1b0] sm:$0xff]
  %v139 = vld [vmem:[#allocation2 + $0x1b8] sm:$0xff]
  %v140 = vld [vmem:[#allocation2 + $0x1c0] sm:$0xff]
  %v141 = vld [vmem:[#allocation2 + $0x1c8] sm:$0xff]
  %v142 = vld [vmem:[#allocation2 + $0x1d0] sm:$0xff]
  %v143 = vld [vmem:[#allocation2 + $0x1d8] sm:$0xff]
  %v144 = vld [vmem:[#allocation2 + $0x1e0] sm:$0xff]
  %v145 = vld [vmem:[#allocation2 + $0x1e8] sm:$0xff]
  %v146 = vld [vmem:[#allocation2 + $0x1f0] sm:$0xff]
  %v147 = vld [vmem:[#allocation2 + $0x1f8] sm:$0xff]
  %v148 = vld [vmem:[%s0] sm:$0xf]
  %v149 = vld [vmem:[%s0 + $0x4] sm:$0xf]
  %v150 = vld [vmem:[%s0 + $0x8] sm:$0xf]
  %v151 = vld [vmem:[%s0 + $0xc] sm:$0xf]
  %v152 = vld [vmem:[%s0 + $0x10] sm:$0xf]
  %v153 = vld [vmem:[%s0 + $0x14] sm:$0xf]
  %v154 = vld [vmem:[%s0 + $0x18] sm:$0xf]
  %v155 = vld [vmem:[%s0 + $0x1c] sm:$0xf]
  %v156 = vld [vmem:[%s0 + $0x20] sm:$0xf]
  %v157 = vld [vmem:[%s0 + $0x24] sm:$0xf]
  %v158 = vld [vmem:[%s0 + $0x28] sm:$0xf]
  %v159 = vld [vmem:[%s0 + $0x2c] sm:$0xf]
  %v160 = vld [vmem:[%s0 + $0x30] sm:$0xf]
  %v161 = vld [vmem:[%s0 + $0x34] sm:$0xf]
  %v162 = vld [vmem:[%s0 + $0x38] sm:$0xf]
  %v163 = vld [vmem:[%s0 + $0x3c] sm:$0xf]
  %v164 = vld [vmem:[%s0 + $0x40] sm:$0xf]
  %v165 = vld [vmem:[%s0 + $0x44] sm:$0xf]
  %v166 = vld [vmem:[%s0 + $0x48] sm:$0xf]
  %v167 = vld [vmem:[%s0 + $0x4c] sm:$0xf]
  %v168 = vld [vmem:[%s0 + $0x50] sm:$0xf]
  %v169 = vld [vmem:[%s0 + $0x54] sm:$0xf]
  %v170 = vld [vmem:[%s0 + $0x58] sm:$0xf]
  %v171 = vld [vmem:[%s0 + $0x5c] sm:$0xf]
  %v172 = vld [vmem:[%s0 + $0x60] sm:$0xf]
  %v173 = vld [vmem:[%s0 + $0x64] sm:$0xf]
  %v174 = vld [vmem:[%s0 + $0x68] sm:$0xf]
  %v175 = vld [vmem:[%s0 + $0x6c] sm:$0xf]
  %v176 = vld [vmem:[%s0 + $0x70] sm:$0xf]
  %v177 = vld [vmem:[%s0 + $0x74] sm:$0xf]
  %v178 = vld [vmem:[%s0 + $0x78] sm:$0xf]
  %v179 = vld [vmem:[%s0 + $0x7c] sm:$0xf]
  %v180 = vld [vmem:[%s0 + $0x80] sm:$0xf]
  %v181 = vld [vmem:[%s0 + $0x84] sm:$0xf]
  %v182 = vld [vmem:[%s0 + $0x88] sm:$0xf]
  %v183 = vld [vmem:[%s0 + $0x8c] sm:$0xf]
  %v184 = vld [vmem:[%s0 + $0x90] sm:$0xf]
  %v185 = vld [vmem:[%s0 + $0x94] sm:$0xf]
  %v186 = vld [vmem:[%s0 + $0x98] sm:$0xf]
  %v187 = vld [vmem:[%s0 + $0x9c] sm:$0xf]
  %v188 = vld [vmem:[%s0 + $0xa0] sm:$0xf]
  %v189 = vld [vmem:[%s0 + $0xa4] sm:$0xf]
  %v190 = vld [vmem:[%s0 + $0xa8] sm:$0xf]
  %v191 = vld [vmem:[%s0 + $0xac] sm:$0xf]
  %v192 = vld [vmem:[%s0 + $0xb0] sm:$0xf]
  %v193 = vld [vmem:[%s0 + $0xb4] sm:$0xf]
  %v194 = vld [vmem:[%s0 + $0xb8] sm:$0xf]
  %v195 = vld [vmem:[%s0 + $0xbc] sm:$0xf]
  %v196 = vld [vmem:[%s0 + $0xc0] sm:$0xf]
  %v197 = vld [vmem:[%s0 + $0xc4] sm:$0xf]
  %v198 = vld [vmem:[%s0 + $0xc8] sm:$0xf]
  %v199 = vld [vmem:[%s0 + $0xcc] sm:$0xf]
  %v200 = vld [vmem:[%s0 + $0xd0] sm:$0xf]
  %v201 = vld [vmem:[%s0 + $0xd4] sm:$0xf]
  %v202 = vld [vmem:[%s0 + $0xd8] sm:$0xf]
  %v203 = vld [vmem:[%s0 + $0xdc] sm:$0xf]
  %v204 = vld [vmem:[%s0 + $0xe0] sm:$0xf]
  %v205 = vld [vmem:[%s0 + $0xe4] sm:$0xf]
  %v206 = vld [vmem:[%s0 + $0xe8] sm:$0xf]
  %v207 = vld [vmem:[%s0 + $0xec] sm:$0xf]
  %v208 = vld [vmem:[%s0 + $0xf0] sm:$0xf]
  %v209 = vld [vmem:[%s0 + $0xf4] sm:$0xf]
  %v210 = vld [vmem:[%s0 + $0xf8] sm:$0xf]
  %v211 = vld [vmem:[%s0 + $0xfc] sm:$0xf]
  %v212 = vld [vmem:[%s1] sm:$0xf]
  %v213 = vld [vmem:[%s1 + $0x4] sm:$0xf]
  %v278 = vunpack.c.l.b16 %v148
  %v279 = vunpack.c.l.b16 %v149
  %v280 = vunpack.c.l.b16 %v150
  %v281 = vunpack.c.l.b16 %v151
  %v282 = vunpack.c.l.b16 %v152
  %v283 = vunpack.c.l.b16 %v153
  %v284 = vunpack.c.l.b16 %v154
  %v285 = vunpack.c.l.b16 %v155
  %v286 = vunpack.c.l.b16 %v156
  %v287 = vunpack.c.l.b16 %v157
  %v288 = vunpack.c.l.b16 %v158
  %v289 = vunpack.c.l.b16 %v159
  %v290 = vunpack.c.l.b16 %v160
  %v291 = vunpack.c.l.b16 %v161
  %v292 = vunpack.c.l.b16 %v162
  %v293 = vunpack.c.l.b16 %v163
  %v294 = vunpack.c.l.b16 %v164
  %v295 = vunpack.c.l.b16 %v165
  %v296 = vunpack.c.l.b16 %v166
  %v297 = vunpack.c.l.b16 %v167
  %v298 = vunpack.c.l.b16 %v168
  %v299 = vunpack.c.l.b16 %v169
  %v300 = vunpack.c.l.b16 %v170
  %v301 = vunpack.c.l.b16 %v171
  %v302 = vunpack.c.l.b16 %v172
  %v303 = vunpack.c.l.b16 %v173
  %v304 = vunpack.c.l.b16 %v174
  %v305 = vunpack.c.l.b16 %v175
  %v306 = vunpack.c.l.b16 %v176
  %v307 = vunpack.c.l.b16 %v177
  %v308 = vunpack.c.l.b16 %v178
  %v309 = vunpack.c.l.b16 %v179
  %v310 = vunpack.c.l.b16 %v180
  %v311 = vunpack.c.l.b16 %v181
  %v312 = vunpack.c.l.b16 %v182
  %v313 = vunpack.c.l.b16 %v183
  %v314 = vunpack.c.l.b16 %v184
  %v315 = vunpack.c.l.b16 %v185
  %v316 = vunpack.c.l.b16 %v186
  %v317 = vunpack.c.l.b16 %v187
  %v318 = vunpack.c.l.b16 %v188
  %v319 = vunpack.c.l.b16 %v189
  %v320 = vunpack.c.l.b16 %v190
  %v321 = vunpack.c.l.b16 %v191
  %v322 = vunpack.c.l.b16 %v192
  %v323 = vunpack.c.l.b16 %v193
  %v324 = vunpack.c.l.b16 %v194
  %v325 = vunpack.c.l.b16 %v195
  %v326 = vunpack.c.l.b16 %v196
  %v327 = vunpack.c.l.b16 %v197
  %v328 = vunpack.c.l.b16 %v198
  %v329 = vunpack.c.l.b16 %v199
  %v330 = vunpack.c.l.b16 %v200
  %v331 = vunpack.c.l.b16 %v201
  %v332 = vunpack.c.l.b16 %v202
  %v333 = vunpack.c.l.b16 %v203
  %v334 = vunpack.c.l.b16 %v204
  %v335 = vunpack.c.l.b16 %v205
  %v336 = vunpack.c.l.b16 %v206
  %v337 = vunpack.c.l.b16 %v207
  %v338 = vunpack.c.l.b16 %v208
  %v339 = vunpack.c.l.b16 %v209
  %v340 = vunpack.c.l.b16 %v210
  %v341 = vunpack.c.l.b16 %v211
  %v342 = vpack.c.b16 %v279, %v278
  %v343 = vpack.c.b16 %v281, %v280
  %v344 = vpack.c.b16 %v283, %v282
  %v345 = vpack.c.b16 %v285, %v284
  %v346 = vpack.c.b16 %v287, %v286
  %v347 = vpack.c.b16 %v289, %v288
  %v348 = vpack.c.b16 %v291, %v290
  %v349 = vpack.c.b16 %v293, %v292
  %v350 = vpack.c.b16 %v295, %v294
  %v351 = vpack.c.b16 %v297, %v296
  %v352 = vpack.c.b16 %v299, %v298
  %v353 = vpack.c.b16 %v301, %v300
  %v354 = vpack.c.b16 %v303, %v302
  %v355 = vpack.c.b16 %v305, %v304
  %v356 = vpack.c.b16 %v307, %v306
  %v357 = vpack.c.b16 %v309, %v308
  %v358 = vpack.c.b16 %v311, %v310
  %v359 = vpack.c.b16 %v313, %v312
  %v360 = vpack.c.b16 %v315, %v314
  %v361 = vpack.c.b16 %v317, %v316
  %v362 = vpack.c.b16 %v319, %v318
  %v363 = vpack.c.b16 %v321, %v320
  %v364 = vpack.c.b16 %v323, %v322
  %v365 = vpack.c.b16 %v325, %v324
  %v366 = vpack.c.b16 %v327, %v326
  %v367 = vpack.c.b16 %v329, %v328
  %v368 = vpack.c.b16 %v331, %v330
  %v369 = vpack.c.b16 %v333, %v332
  %v370 = vpack.c.b16 %v335, %v334
  %v371 = vpack.c.b16 %v337, %v336
  %v372 = vpack.c.b16 %v339, %v338
  %v373 = vpack.c.b16 %v341, %v340
  %v376 = vunpack.c.l.b16 %v212
  %v377 = vunpack.c.l.b16 %v213
  %v378 = vpack.c.b16 %v377, %v376
  %vm380 = vcmask 130048
  %v382 = vsel %vm380, %v342, 0
  %v385 = vsel %vm380, %v343, 0
  %v388 = vsel %vm380, %v344, 0
  %v391 = vsel %vm380, %v345, 0
  %v394 = vsel %vm380, %v346, 0
  %v397 = vsel %vm380, %v347, 0
  %v400 = vsel %vm380, %v348, 0
  %v403 = vsel %vm380, %v349, 0
  %v406 = vsel %vm380, %v350, 0
  %v409 = vsel %vm380, %v351, 0
  %v412 = vsel %vm380, %v352, 0
  %v415 = vsel %vm380, %v353, 0
  %v418 = vsel %vm380, %v354, 0
  %v421 = vsel %vm380, %v355, 0
  %v424 = vsel %vm380, %v356, 0
  %v427 = vsel %vm380, %v357, 0
  %v430 = vsel %vm380, %v358, 0
  %v433 = vsel %vm380, %v359, 0
  %v436 = vsel %vm380, %v360, 0
  %v439 = vsel %vm380, %v361, 0
  %v442 = vsel %vm380, %v362, 0
  %v445 = vsel %vm380, %v363, 0
  %v448 = vsel %vm380, %v364, 0
  %v451 = vsel %vm380, %v365, 0
  %v454 = vsel %vm380, %v366, 0
  %v457 = vsel %vm380, %v367, 0
  %v460 = vsel %vm380, %v368, 0
  %v463 = vsel %vm380, %v369, 0
  %v466 = vsel %vm380, %v370, 0
  %v469 = vsel %vm380, %v371, 0
  %v472 = vsel %vm380, %v372, 0
  %v475 = vsel %vm380, %v373, 0
  %477 = vmatpush.bf16.msra.mxu0 0
  %478 = vmatpush.bf16.msra.mxu0 0
  %479 = vmatpush.bf16.msra.mxu0 0
  %480 = vmatpush.bf16.msra.mxu0 0
  %481 = vmatpush.bf16.msra.mxu0 0
  %482 = vmatpush.bf16.msra.mxu0 0
  %483 = vmatpush.bf16.msra.mxu0 0
  %484 = vmatpush.bf16.msra.mxu0 %v378
  %485 = vmatmul.bf16.gmra.mxu0 %v382
  %v486 = vpop.f32.mrf.mxu0
  %v487 = vadd.f32 0.0, %v486
  %v488 = vpop.f32.mrf.mxu0
  %v489 = vadd.f32 0.0, %v488
  %490 = vmatmul.bf16.gmra.mxu0 %v385
  %v491 = vpop.f32.mrf.mxu0
  %v492 = vadd.f32 0.0, %v491
  %v493 = vpop.f32.mrf.mxu0
  %v494 = vadd.f32 0.0, %v493
  %495 = vmatmul.bf16.gmra.mxu0 %v388
  %v496 = vpop.f32.mrf.mxu0
  %v497 = vadd.f32 0.0, %v496
  %v498 = vpop.f32.mrf.mxu0
  %v499 = vadd.f32 0.0, %v498
  %500 = vmatmul.bf16.gmra.mxu0 %v391
  %v501 = vpop.f32.mrf.mxu0
  %v502 = vadd.f32 0.0, %v501
  %v503 = vpop.f32.mrf.mxu0
  %v504 = vadd.f32 0.0, %v503
  %505 = vmatmul.bf16.gmra.mxu0 %v394
  %v506 = vpop.f32.mrf.mxu0
  %v507 = vadd.f32 0.0, %v506
  %v508 = vpop.f32.mrf.mxu0
  %v509 = vadd.f32 0.0, %v508
  %510 = vmatmul.bf16.gmra.mxu0 %v397
  %v511 = vpop.f32.mrf.mxu0
  %v512 = vadd.f32 0.0, %v511
  %v513 = vpop.f32.mrf.mxu0
  %v514 = vadd.f32 0.0, %v513
  %515 = vmatmul.bf16.gmra.mxu0 %v400
  %v516 = vpop.f32.mrf.mxu0
  %v517 = vadd.f32 0.0, %v516
  %v518 = vpop.f32.mrf.mxu0
  %v519 = vadd.f32 0.0, %v518
  %520 = vmatmul.bf16.gmra.mxu0 %v403
  %v521 = vpop.f32.mrf.mxu0
  %v522 = vadd.f32 0.0, %v521
  %v523 = vpop.f32.mrf.mxu0
  %v524 = vadd.f32 0.0, %v523
  %525 = vmatmul.bf16.gmra.mxu0 %v406
  %v526 = vpop.f32.mrf.mxu0
  %v527 = vadd.f32 0.0, %v526
  %v528 = vpop.f32.mrf.mxu0
  %v529 = vadd.f32 0.0, %v528
  %530 = vmatmul.bf16.gmra.mxu0 %v409
  %v531 = vpop.f32.mrf.mxu0
  %v532 = vadd.f32 0.0, %v531
  %v533 = vpop.f32.mrf.mxu0
  %v534 = vadd.f32 0.0, %v533
  %535 = vmatmul.bf16.gmra.mxu0 %v412
  %v536 = vpop.f32.mrf.mxu0
  %v537 = vadd.f32 0.0, %v536
  %v538 = vpop.f32.mrf.mxu0
  %v539 = vadd.f32 0.0, %v538
  %540 = vmatmul.bf16.gmra.mxu0 %v415
  %v541 = vpop.f32.mrf.mxu0
  %v542 = vadd.f32 0.0, %v541
  %v543 = vpop.f32.mrf.mxu0
  %v544 = vadd.f32 0.0, %v543
  %545 = vmatmul.bf16.gmra.mxu0 %v418
  %v546 = vpop.f32.mrf.mxu0
  %v547 = vadd.f32 0.0, %v546
  %v548 = vpop.f32.mrf.mxu0
  %v549 = vadd.f32 0.0, %v548
  %550 = vmatmul.bf16.gmra.mxu0 %v421
  %v551 = vpop.f32.mrf.mxu0
  %v552 = vadd.f32 0.0, %v551
  %v553 = vpop.f32.mrf.mxu0
  %v554 = vadd.f32 0.0, %v553
  %555 = vmatmul.bf16.gmra.mxu0 %v424
  %v556 = vpop.f32.mrf.mxu0
  %v557 = vadd.f32 0.0, %v556
  %v558 = vpop.f32.mrf.mxu0
  %v559 = vadd.f32 0.0, %v558
  %560 = vmatmul.bf16.gmra.mxu0 %v427
  %v561 = vpop.f32.mrf.mxu0
  %v562 = vadd.f32 0.0, %v561
  %v563 = vpop.f32.mrf.mxu0
  %v564 = vadd.f32 0.0, %v563
  %565 = vmatmul.bf16.gmra.mxu0 %v430
  %v566 = vpop.f32.mrf.mxu0
  %v567 = vadd.f32 0.0, %v566
  %v568 = vpop.f32.mrf.mxu0
  %v569 = vadd.f32 0.0, %v568
  %570 = vmatmul.bf16.gmra.mxu0 %v433
  %v571 = vpop.f32.mrf.mxu0
  %v572 = vadd.f32 0.0, %v571
  %v573 = vpop.f32.mrf.mxu0
  %v574 = vadd.f32 0.0, %v573
  %575 = vmatmul.bf16.gmra.mxu0 %v436
  %v576 = vpop.f32.mrf.mxu0
  %v577 = vadd.f32 0.0, %v576
  %v578 = vpop.f32.mrf.mxu0
  %v579 = vadd.f32 0.0, %v578
  %580 = vmatmul.bf16.gmra.mxu0 %v439
  %v581 = vpop.f32.mrf.mxu0
  %v582 = vadd.f32 0.0, %v581
  %v583 = vpop.f32.mrf.mxu0
  %v584 = vadd.f32 0.0, %v583
  %585 = vmatmul.bf16.gmra.mxu0 %v442
  %v586 = vpop.f32.mrf.mxu0
  %v587 = vadd.f32 0.0, %v586
  %v588 = vpop.f32.mrf.mxu0
  %v589 = vadd.f32 0.0, %v588
  %590 = vmatmul.bf16.gmra.mxu0 %v445
  %v591 = vpop.f32.mrf.mxu0
  %v592 = vadd.f32 0.0, %v591
  %v593 = vpop.f32.mrf.mxu0
  %v594 = vadd.f32 0.0, %v593
  %595 = vmatmul.bf16.gmra.mxu0 %v448
  %v596 = vpop.f32.mrf.mxu0
  %v597 = vadd.f32 0.0, %v596
  %v598 = vpop.f32.mrf.mxu0
  %v599 = vadd.f32 0.0, %v598
  %600 = vmatmul.bf16.gmra.mxu0 %v451
  %v601 = vpop.f32.mrf.mxu0
  %v602 = vadd.f32 0.0, %v601
  %v603 = vpop.f32.mrf.mxu0
  %v604 = vadd.f32 0.0, %v603
  %605 = vmatmul.bf16.gmra.mxu0 %v454
  %v606 = vpop.f32.mrf.mxu0
  %v607 = vadd.f32 0.0, %v606
  %v608 = vpop.f32.mrf.mxu0
  %v609 = vadd.f32 0.0, %v608
  %610 = vmatmul.bf16.gmra.mxu0 %v457
  %v611 = vpop.f32.mrf.mxu0
  %v612 = vadd.f32 0.0, %v611
  %v613 = vpop.f32.mrf.mxu0
  %v614 = vadd.f32 0.0, %v613
  %615 = vmatmul.bf16.gmra.mxu0 %v460
  %v616 = vpop.f32.mrf.mxu0
  %v617 = vadd.f32 0.0, %v616
  %v618 = vpop.f32.mrf.mxu0
  %v619 = vadd.f32 0.0, %v618
  %620 = vmatmul.bf16.gmra.mxu0 %v463
  %v621 = vpop.f32.mrf.mxu0
  %v622 = vadd.f32 0.0, %v621
  %v623 = vpop.f32.mrf.mxu0
  %v624 = vadd.f32 0.0, %v623
  %625 = vmatmul.bf16.gmra.mxu0 %v466
  %v626 = vpop.f32.mrf.mxu0
  %v627 = vadd.f32 0.0, %v626
  %v628 = vpop.f32.mrf.mxu0
  %v629 = vadd.f32 0.0, %v628
  %630 = vmatmul.bf16.gmra.mxu0 %v469
  %v631 = vpop.f32.mrf.mxu0
  %v632 = vadd.f32 0.0, %v631
  %v633 = vpop.f32.mrf.mxu0
  %v634 = vadd.f32 0.0, %v633
  %635 = vmatmul.bf16.gmra.mxu0 %v472
  %v636 = vpop.f32.mrf.mxu0
  %v637 = vadd.f32 0.0, %v636
  %v638 = vpop.f32.mrf.mxu0
  %v639 = vadd.f32 0.0, %v638
  %640 = vmatmul.bf16.gmra.mxu0 %v475
  %v641 = vpop.f32.mrf.mxu0
  %v642 = vadd.f32 0.0, %v641
  %v643 = vpop.f32.mrf.mxu0
  %v644 = vadd.f32 0.0, %v643
  %645 = vdwg.mxu0
  %v646 = vadd.f32 %v84, %v487
  %v647 = vadd.f32 %v85, %v489
  %v648 = vadd.f32 %v86, %v492
  %v649 = vadd.f32 %v87, %v494
  %v650 = vadd.f32 %v88, %v497
  %v651 = vadd.f32 %v89, %v499
  %v652 = vadd.f32 %v90, %v502
  %v653 = vadd.f32 %v91, %v504
  %v654 = vadd.f32 %v92, %v507
  %v655 = vadd.f32 %v93, %v509
  %v656 = vadd.f32 %v94, %v512
  %v657 = vadd.f32 %v95, %v514
  %v658 = vadd.f32 %v96, %v517
  %v659 = vadd.f32 %v97, %v519
  %v660 = vadd.f32 %v98, %v522
  %v661 = vadd.f32 %v99, %v524
  %v662 = vadd.f32 %v100, %v527
  %v663 = vadd.f32 %v101, %v529
  %v664 = vadd.f32 %v102, %v532
  %v665 = vadd.f32 %v103, %v534
  %v666 = vadd.f32 %v104, %v537
  %v667 = vadd.f32 %v105, %v539
  %v668 = vadd.f32 %v106, %v542
  %v669 = vadd.f32 %v107, %v544
  %v670 = vadd.f32 %v108, %v547
  %v671 = vadd.f32 %v109, %v549
  %v672 = vadd.f32 %v110, %v552
  %v673 = vadd.f32 %v111, %v554
  %v674 = vadd.f32 %v112, %v557
  %v675 = vadd.f32 %v113, %v559
  %v676 = vadd.f32 %v114, %v562
  %v677 = vadd.f32 %v115, %v564
  %v678 = vadd.f32 %v116, %v567
  %v679 = vadd.f32 %v117, %v569
  %v680 = vadd.f32 %v118, %v572
  %v681 = vadd.f32 %v119, %v574
  %v682 = vadd.f32 %v120, %v577
  %v683 = vadd.f32 %v121, %v579
  %v684 = vadd.f32 %v122, %v582
  %v685 = vadd.f32 %v123, %v584
  %v686 = vadd.f32 %v124, %v587
  %v687 = vadd.f32 %v125, %v589
  %v688 = vadd.f32 %v126, %v592
  %v689 = vadd.f32 %v127, %v594
  %v690 = vadd.f32 %v128, %v597
  %v691 = vadd.f32 %v129, %v599
  %v692 = vadd.f32 %v130, %v602
  %v693 = vadd.f32 %v131, %v604
  %v694 = vadd.f32 %v132, %v607
  %v695 = vadd.f32 %v133, %v609
  %v696 = vadd.f32 %v134, %v612
  %v697 = vadd.f32 %v135, %v614
  %v698 = vadd.f32 %v136, %v617
  %v699 = vadd.f32 %v137, %v619
  %v700 = vadd.f32 %v138, %v622
  %v701 = vadd.f32 %v139, %v624
  %v702 = vadd.f32 %v140, %v627
  %v703 = vadd.f32 %v141, %v629
  %v704 = vadd.f32 %v142, %v632
  %v705 = vadd.f32 %v143, %v634
  %v706 = vadd.f32 %v144, %v637
  %v707 = vadd.f32 %v145, %v639
  %v708 = vadd.f32 %v146, %v642
  %v709 = vadd.f32 %v147, %v644
  %vm710 = vcmask 523264
  %711 = vst.msk [vmem:[#allocation2] sm:$0xff] %vm710, %v646
  %712 = vst.msk [vmem:[#allocation2 + $0x8] sm:$0xff] %vm710, %v647
  %713 = vst.msk [vmem:[#allocation2 + $0x10] sm:$0xff] %vm710, %v648
  %714 = vst.msk [vmem:[#allocation2 + $0x18] sm:$0xff] %vm710, %v649
  %715 = vst.msk [vmem:[#allocation2 + $0x20] sm:$0xff] %vm710, %v650
  %716 = vst.msk [vmem:[#allocation2 + $0x28] sm:$0xff] %vm710, %v651
  %717 = vst.msk [vmem:[#allocation2 + $0x30] sm:$0xff] %vm710, %v652
  %718 = vst.msk [vmem:[#allocation2 + $0x38] sm:$0xff] %vm710, %v653
  %719 = vst.msk [vmem:[#allocation2 + $0x40] sm:$0xff] %vm710, %v654
  %720 = vst.msk [vmem:[#allocation2 + $0x48] sm:$0xff] %vm710, %v655
  %721 = vst.msk [vmem:[#allocation2 + $0x50] sm:$0xff] %vm710, %v656
  %722 = vst.msk [vmem:[#allocation2 + $0x58] sm:$0xff] %vm710, %v657
  %723 = vst.msk [vmem:[#allocation2 + $0x60] sm:$0xff] %vm710, %v658
  %724 = vst.msk [vmem:[#allocation2 + $0x68] sm:$0xff] %vm710, %v659
  %725 = vst.msk [vmem:[#allocation2 + $0x70] sm:$0xff] %vm710, %v660
  %726 = vst.msk [vmem:[#allocation2 + $0x78] sm:$0xff] %vm710, %v661
  %727 = vst.msk [vmem:[#allocation2 + $0x80] sm:$0xff] %vm710, %v662
  %728 = vst.msk [vmem:[#allocation2 + $0x88] sm:$0xff] %vm710, %v663
  %729 = vst.msk [vmem:[#allocation2 + $0x90] sm:$0xff] %vm710, %v664
  %730 = vst.msk [vmem:[#allocation2 + $0x98] sm:$0xff] %vm710, %v665
  %731 = vst.msk [vmem:[#allocation2 + $0xa0] sm:$0xff] %vm710, %v666
  %732 = vst.msk [vmem:[#allocation2 + $0xa8] sm:$0xff] %vm710, %v667
  %733 = vst.msk [vmem:[#allocation2 + $0xb0] sm:$0xff] %vm710, %v668
  %734 = vst.msk [vmem:[#allocation2 + $0xb8] sm:$0xff] %vm710, %v669
  %735 = vst.msk [vmem:[#allocation2 + $0xc0] sm:$0xff] %vm710, %v670
  %736 = vst.msk [vmem:[#allocation2 + $0xc8] sm:$0xff] %vm710, %v671
  %737 = vst.msk [vmem:[#allocation2 + $0xd0] sm:$0xff] %vm710, %v672
  %738 = vst.msk [vmem:[#allocation2 + $0xd8] sm:$0xff] %vm710, %v673
  %739 = vst.msk [vmem:[#allocation2 + $0xe0] sm:$0xff] %vm710, %v674
  %740 = vst.msk [vmem:[#allocation2 + $0xe8] sm:$0xff] %vm710, %v675
  %741 = vst.msk [vmem:[#allocation2 + $0xf0] sm:$0xff] %vm710, %v676
  %742 = vst.msk [vmem:[#allocation2 + $0xf8] sm:$0xff] %vm710, %v677
  %743 = vst.msk [vmem:[#allocation2 + $0x100] sm:$0xff] %vm710, %v678
  %744 = vst.msk [vmem:[#allocation2 + $0x108] sm:$0xff] %vm710, %v679
  %745 = vst.msk [vmem:[#allocation2 + $0x110] sm:$0xff] %vm710, %v680
  %746 = vst.msk [vmem:[#allocation2 + $0x118] sm:$0xff] %vm710, %v681
  %747 = vst.msk [vmem:[#allocation2 + $0x120] sm:$0xff] %vm710, %v682
  %748 = vst.msk [vmem:[#allocation2 + $0x128] sm:$0xff] %vm710, %v683
  %749 = vst.msk [vmem:[#allocation2 + $0x130] sm:$0xff] %vm710, %v684
  %750 = vst.msk [vmem:[#allocation2 + $0x138] sm:$0xff] %vm710, %v685
  %751 = vst.msk [vmem:[#allocation2 + $0x140] sm:$0xff] %vm710, %v686
  %752 = vst.msk [vmem:[#allocation2 + $0x148] sm:$0xff] %vm710, %v687
  %753 = vst.msk [vmem:[#allocation2 + $0x150] sm:$0xff] %vm710, %v688
  %754 = vst.msk [vmem:[#allocation2 + $0x158] sm:$0xff] %vm710, %v689
  %755 = vst.msk [vmem:[#allocation2 + $0x160] sm:$0xff] %vm710, %v690
  %756 = vst.msk [vmem:[#allocation2 + $0x168] sm:$0xff] %vm710, %v691
  %757 = vst.msk [vmem:[#allocation2 + $0x170] sm:$0xff] %vm710, %v692
  %758 = vst.msk [vmem:[#allocation2 + $0x178] sm:$0xff] %vm710, %v693
  %759 = vst.msk [vmem:[#allocation2 + $0x180] sm:$0xff] %vm710, %v694
  %760 = vst.msk [vmem:[#allocation2 + $0x188] sm:$0xff] %vm710, %v695
  %761 = vst.msk [vmem:[#allocation2 + $0x190] sm:$0xff] %vm710, %v696
  %762 = vst.msk [vmem:[#allocation2 + $0x198] sm:$0xff] %vm710, %v697
  %763 = vst.msk [vmem:[#allocation2 + $0x1a0] sm:$0xff] %vm710, %v698
  %764 = vst.msk [vmem:[#allocation2 + $0x1a8] sm:$0xff] %vm710, %v699
  %765 = vst.msk [vmem:[#allocation2 + $0x1b0] sm:$0xff] %vm710, %v700
  %766 = vst.msk [vmem:[#allocation2 + $0x1b8] sm:$0xff] %vm710, %v701
  %767 = vst.msk [vmem:[#allocation2 + $0x1c0] sm:$0xff] %vm710, %v702
  %768 = vst.msk [vmem:[#allocation2 + $0x1c8] sm:$0xff] %vm710, %v703
  %769 = vst.msk [vmem:[#allocation2 + $0x1d0] sm:$0xff] %vm710, %v704
  %770 = vst.msk [vmem:[#allocation2 + $0x1d8] sm:$0xff] %vm710, %v705
  %771 = vst.msk [vmem:[#allocation2 + $0x1e0] sm:$0xff] %vm710, %v706
  %772 = vst.msk [vmem:[#allocation2 + $0x1e8] sm:$0xff] %vm710, %v707
  %773 = vst.msk [vmem:[#allocation2 + $0x1f0] sm:$0xff] %vm710, %v708
  %774 = vst.msk [vmem:[#allocation2 + $0x1f8] sm:$0xff] %vm710, %v709
  // Predicated region
  $region18: #{tpu_custom_call.1} parent=0 // pred_check
    %p775 = pneg %p15
  $region19: #{tpu_custom_call.1} parent=0 // pred_check_branch
    %777 = sbr.rel (%p775) target = $region21
  $region20: #{tpu_custom_call.1} parent=0 // pred_region
    %v778 = vld [vmem:[#allocation2] sm:$0xff]
    %v779 = vld [vmem:[#allocation2 + $0x8] sm:$0xff]
    %v780 = vld [vmem:[#allocation2 + $0x10] sm:$0xff]
    %v781 = vld [vmem:[#allocation2 + $0x18] sm:$0xff]
    %v782 = vld [vmem:[#allocation2 + $0x20] sm:$0xff]
    %v783 = vld [vmem:[#allocation2 + $0x28] sm:$0xff]
    %v784 = vld [vmem:[#allocation2 + $0x30] sm:$0xff]
    %v785 = vld [vmem:[#allocation2 + $0x38] sm:$0xff]
    %v786 = vld [vmem:[#allocation2 + $0x40] sm:$0xff]
    %v787 = vld [vmem:[#allocation2 + $0x48] sm:$0xff]
    %v788 = vld [vmem:[#allocation2 + $0x50] sm:$0xff]
    %v789 = vld [vmem:[#allocation2 + $0x58] sm:$0xff]
    %v790 = vld [vmem:[#allocation2 + $0x60] sm:$0xff]
    %v791 = vld [vmem:[#allocation2 + $0x68] sm:$0xff]
    %v792 = vld [vmem:[#allocation2 + $0x70] sm:$0xff]
    %v793 = vld [vmem:[#allocation2 + $0x78] sm:$0xff]
    %v794 = vld [vmem:[#allocation2 + $0x80] sm:$0xff]
    %v795 = vld [vmem:[#allocation2 + $0x88] sm:$0xff]
    %v796 = vld [vmem:[#allocation2 + $0x90] sm:$0xff]
    %v797 = vld [vmem:[#allocation2 + $0x98] sm:$0xff]
    %v798 = vld [vmem:[#allocation2 + $0xa0] sm:$0xff]
    %v799 = vld [vmem:[#allocation2 + $0xa8] sm:$0xff]
    %v800 = vld [vmem:[#allocation2 + $0xb0] sm:$0xff]
    %v801 = vld [vmem:[#allocation2 + $0xb8] sm:$0xff]
    %v802 = vld [vmem:[#allocation2 + $0xc0] sm:$0xff]
    %v803 = vld [vmem:[#allocation2 + $0xc8] sm:$0xff]
    %v804 = vld [vmem:[#allocation2 + $0xd0] sm:$0xff]
    %v805 = vld [vmem:[#allocation2 + $0xd8] sm:$0xff]
    %v806 = vld [vmem:[#allocation2 + $0xe0] sm:$0xff]
    %v807 = vld [vmem:[#allocation2 + $0xe8] sm:$0xff]
    %v808 = vld [vmem:[#allocation2 + $0xf0] sm:$0xff]
    %v809 = vld [vmem:[#allocation2 + $0xf8] sm:$0xff]
    %v810 = vld [vmem:[#allocation2 + $0x100] sm:$0xff]
    %v811 = vld [vmem:[#allocation2 + $0x108] sm:$0xff]
    %v812 = vld [vmem:[#allocation2 + $0x110] sm:$0xff]
    %v813 = vld [vmem:[#allocation2 + $0x118] sm:$0xff]
    %v814 = vld [vmem:[#allocation2 + $0x120] sm:$0xff]
    %v815 = vld [vmem:[#allocation2 + $0x128] sm:$0xff]
    %v816 = vld [vmem:[#allocation2 + $0x130] sm:$0xff]
    %v817 = vld [vmem:[#allocation2 + $0x138] sm:$0xff]
    %v818 = vld [vmem:[#allocation2 + $0x140] sm:$0xff]
    %v819 = vld [vmem:[#allocation2 + $0x148] sm:$0xff]
    %v820 = vld [vmem:[#allocation2 + $0x150] sm:$0xff]
    %v821 = vld [vmem:[#allocation2 + $0x158] sm:$0xff]
    %v822 = vld [vmem:[#allocation2 + $0x160] sm:$0xff]
    %v823 = vld [vmem:[#allocation2 + $0x168] sm:$0xff]
    %v824 = vld [vmem:[#allocation2 + $0x170] sm:$0xff]
    %v825 = vld [vmem:[#allocation2 + $0x178] sm:$0xff]
    %v826 = vld [vmem:[#allocation2 + $0x180] sm:$0xff]
    %v827 = vld [vmem:[#allocation2 + $0x188] sm:$0xff]
    %v828 = vld [vmem:[#allocation2 + $0x190] sm:$0xff]
    %v829 = vld [vmem:[#allocation2 + $0x198] sm:$0xff]
    %v830 = vld [vmem:[#allocation2 + $0x1a0] sm:$0xff]
    %v831 = vld [vmem:[#allocation2 + $0x1a8] sm:$0xff]
    %v832 = vld [vmem:[#allocation2 + $0x1b0] sm:$0xff]
    %v833 = vld [vmem:[#allocation2 + $0x1b8] sm:$0xff]
    %v834 = vld [vmem:[#allocation2 + $0x1c0] sm:$0xff]
    %v835 = vld [vmem:[#allocation2 + $0x1c8] sm:$0xff]
    %v836 = vld [vmem:[#allocation2 + $0x1d0] sm:$0xff]
    %v837 = vld [vmem:[#allocation2 + $0x1d8] sm:$0xff]
    %v838 = vld [vmem:[#allocation2 + $0x1e0] sm:$0xff]
    %v839 = vld [vmem:[#allocation2 + $0x1e8] sm:$0xff]
    %v840 = vld [vmem:[#allocation2 + $0x1f0] sm:$0xff]
    %v841 = vld [vmem:[#allocation2 + $0x1f8] sm:$0xff]
    %v842 = vld [vmem:[%s2] sm:$0x1]
    %v844 = vperm.slane %v842, 0
    %v846 = vadd.f32 %v778, %v844
    %v847 = vadd.f32 %v779, %v844
    %v848 = vadd.f32 %v780, %v844
    %v849 = vadd.f32 %v781, %v844
    %v850 = vadd.f32 %v782, %v844
    %v851 = vadd.f32 %v783, %v844
    %v852 = vadd.f32 %v784, %v844
    %v853 = vadd.f32 %v785, %v844
    %v854 = vadd.f32 %v786, %v844
    %v855 = vadd.f32 %v787, %v844
    %v856 = vadd.f32 %v788, %v844
    %v857 = vadd.f32 %v789, %v844
    %v858 = vadd.f32 %v790, %v844
    %v859 = vadd.f32 %v791, %v844
    %v860 = vadd.f32 %v792, %v844
    %v861 = vadd.f32 %v793, %v844
    %v862 = vadd.f32 %v794, %v844
    %v863 = vadd.f32 %v795, %v844
    %v864 = vadd.f32 %v796, %v844
    %v865 = vadd.f32 %v797, %v844
    %v866 = vadd.f32 %v798, %v844
    %v867 = vadd.f32 %v799, %v844
    %v868 = vadd.f32 %v800, %v844
    %v869 = vadd.f32 %v801, %v844
    %v870 = vadd.f32 %v802, %v844
    %v871 = vadd.f32 %v803, %v844
    %v872 = vadd.f32 %v804, %v844
    %v873 = vadd.f32 %v805, %v844
    %v874 = vadd.f32 %v806, %v844
    %v875 = vadd.f32 %v807, %v844
    %v876 = vadd.f32 %v808, %v844
    %v877 = vadd.f32 %v809, %v844
    %v878 = vadd.f32 %v810, %v844
    %v879 = vadd.f32 %v811, %v844
    %v880 = vadd.f32 %v812, %v844
    %v881 = vadd.f32 %v813, %v844
    %v882 = vadd.f32 %v814, %v844
    %v883 = vadd.f32 %v815, %v844
    %v884 = vadd.f32 %v816, %v844
    %v885 = vadd.f32 %v817, %v844
    %v886 = vadd.f32 %v818, %v844
    %v887 = vadd.f32 %v819, %v844
    %v888 = vadd.f32 %v820, %v844
    %v889 = vadd.f32 %v821, %v844
    %v890 = vadd.f32 %v822, %v844
    %v891 = vadd.f32 %v823, %v844
    %v892 = vadd.f32 %v824, %v844
    %v893 = vadd.f32 %v825, %v844
    %v894 = vadd.f32 %v826, %v844
    %v895 = vadd.f32 %v827, %v844
    %v896 = vadd.f32 %v828, %v844
    %v897 = vadd.f32 %v829, %v844
    %v898 = vadd.f32 %v830, %v844
    %v899 = vadd.f32 %v831, %v844
    %v900 = vadd.f32 %v832, %v844
    %v901 = vadd.f32 %v833, %v844
    %v902 = vadd.f32 %v834, %v844
    %v903 = vadd.f32 %v835, %v844
    %v904 = vadd.f32 %v836, %v844
    %v905 = vadd.f32 %v837, %v844
    %v906 = vadd.f32 %v838, %v844
    %v907 = vadd.f32 %v839, %v844
    %v908 = vadd.f32 %v840, %v844
    %v909 = vadd.f32 %v841, %v844
    %910 = vst.msk [vmem:[%s3] sm:$0xff] %vm710, %v846
    %911 = vst.msk [vmem:[%s3 + $0x8] sm:$0xff] %vm710, %v847
    %912 = vst.msk [vmem:[%s3 + $0x10] sm:$0xff] %vm710, %v848
    %913 = vst.msk [vmem:[%s3 + $0x18] sm:$0xff] %vm710, %v849
    %914 = vst.msk [vmem:[%s3 + $0x20] sm:$0xff] %vm710, %v850
    %915 = vst.msk [vmem:[%s3 + $0x28] sm:$0xff] %vm710, %v851
    %916 = vst.msk [vmem:[%s3 + $0x30] sm:$0xff] %vm710, %v852
    %917 = vst.msk [vmem:[%s3 + $0x38] sm:$0xff] %vm710, %v853
    %918 = vst.msk [vmem:[%s3 + $0x40] sm:$0xff] %vm710, %v854
    %919 = vst.msk [vmem:[%s3 + $0x48] sm:$0xff] %vm710, %v855
    %920 = vst.msk [vmem:[%s3 + $0x50] sm:$0xff] %vm710, %v856
    %921 = vst.msk [vmem:[%s3 + $0x58] sm:$0xff] %vm710, %v857
    %922 = vst.msk [vmem:[%s3 + $0x60] sm:$0xff] %vm710, %v858
    %923 = vst.msk [vmem:[%s3 + $0x68] sm:$0xff] %vm710, %v859
    %924 = vst.msk [vmem:[%s3 + $0x70] sm:$0xff] %vm710, %v860
    %925 = vst.msk [vmem:[%s3 + $0x78] sm:$0xff] %vm710, %v861
    %926 = vst.msk [vmem:[%s3 + $0x80] sm:$0xff] %vm710, %v862
    %927 = vst.msk [vmem:[%s3 + $0x88] sm:$0xff] %vm710, %v863
    %928 = vst.msk [vmem:[%s3 + $0x90] sm:$0xff] %vm710, %v864
    %929 = vst.msk [vmem:[%s3 + $0x98] sm:$0xff] %vm710, %v865
    %930 = vst.msk [vmem:[%s3 + $0xa0] sm:$0xff] %vm710, %v866
    %931 = vst.msk [vmem:[%s3 + $0xa8] sm:$0xff] %vm710, %v867
    %932 = vst.msk [vmem:[%s3 + $0xb0] sm:$0xff] %vm710, %v868
    %933 = vst.msk [vmem:[%s3 + $0xb8] sm:$0xff] %vm710, %v869
    %934 = vst.msk [vmem:[%s3 + $0xc0] sm:$0xff] %vm710, %v870
    %935 = vst.msk [vmem:[%s3 + $0xc8] sm:$0xff] %vm710, %v871
    %936 = vst.msk [vmem:[%s3 + $0xd0] sm:$0xff] %vm710, %v872
    %937 = vst.msk [vmem:[%s3 + $0xd8] sm:$0xff] %vm710, %v873
    %938 = vst.msk [vmem:[%s3 + $0xe0] sm:$0xff] %vm710, %v874
    %939 = vst.msk [vmem:[%s3 + $0xe8] sm:$0xff] %vm710, %v875
    %940 = vst.msk [vmem:[%s3 + $0xf0] sm:$0xff] %vm710, %v876
    %941 = vst.msk [vmem:[%s3 + $0xf8] sm:$0xff] %vm710, %v877
    %942 = vst.msk [vmem:[%s3 + $0x100] sm:$0xff] %vm710, %v878
    %943 = vst.msk [vmem:[%s3 + $0x108] sm:$0xff] %vm710, %v879
    %944 = vst.msk [vmem:[%s3 + $0x110] sm:$0xff] %vm710, %v880
    %945 = vst.msk [vmem:[%s3 + $0x118] sm:$0xff] %vm710, %v881
    %946 = vst.msk [vmem:[%s3 + $0x120] sm:$0xff] %vm710, %v882
    %947 = vst.msk [vmem:[%s3 + $0x128] sm:$0xff] %vm710, %v883
    %948 = vst.msk [vmem:[%s3 + $0x130] sm:$0xff] %vm710, %v884
    %949 = vst.msk [vmem:[%s3 + $0x138] sm:$0xff] %vm710, %v885
    %950 = vst.msk [vmem:[%s3 + $0x140] sm:$0xff] %vm710, %v886
    %951 = vst.msk [vmem:[%s3 + $0x148] sm:$0xff] %vm710, %v887
    %952 = vst.msk [vmem:[%s3 + $0x150] sm:$0xff] %vm710, %v888
    %953 = vst.msk [vmem:[%s3 + $0x158] sm:$0xff] %vm710, %v889
    %954 = vst.msk [vmem:[%s3 + $0x160] sm:$0xff] %vm710, %v890
    %955 = vst.msk [vmem:[%s3 + $0x168] sm:$0xff] %vm710, %v891
    %956 = vst.msk [vmem:[%s3 + $0x170] sm:$0xff] %vm710, %v892
    %957 = vst.msk [vmem:[%s3 + $0x178] sm:$0xff] %vm710, %v893
    %958 = vst.msk [vmem:[%s3 + $0x180] sm:$0xff] %vm710, %v894
    %959 = vst.msk [vmem:[%s3 + $0x188] sm:$0xff] %vm710, %v895
    %960 = vst.msk [vmem:[%s3 + $0x190] sm:$0xff] %vm710, %v896
    %961 = vst.msk [vmem:[%s3 + $0x198] sm:$0xff] %vm710, %v897
    %962 = vst.msk [vmem:[%s3 + $0x1a0] sm:$0xff] %vm710, %v898
    %963 = vst.msk [vmem:[%s3 + $0x1a8] sm:$0xff] %vm710, %v899
    %964 = vst.msk [vmem:[%s3 + $0x1b0] sm:$0xff] %vm710, %v900
    %965 = vst.msk [vmem:[%s3 + $0x1b8] sm:$0xff] %vm710, %v901
    %966 = vst.msk [vmem:[%s3 + $0x1c0] sm:$0xff] %vm710, %v902
    %967 = vst.msk [vmem:[%s3 + $0x1c8] sm:$0xff] %vm710, %v903
    %968 = vst.msk [vmem:[%s3 + $0x1d0] sm:$0xff] %vm710, %v904
    %969 = vst.msk [vmem:[%s3 + $0x1d8] sm:$0xff] %vm710, %v905
    %970 = vst.msk [vmem:[%s3 + $0x1e0] sm:$0xff] %vm710, %v906
    %971 = vst.msk [vmem:[%s3 + $0x1e8] sm:$0xff] %vm710, %v907
    %972 = vst.msk [vmem:[%s3 + $0x1f0] sm:$0xff] %vm710, %v908
    %973 = vst.msk [vmem:[%s3 + $0x1f8] sm:$0xff] %vm710, %v909
  $region21: #{tpu_custom_call.1} parent=0 // pred_fallthru
    _
  // Predicated region
  $region22: #{tpu_custom_call.1} parent=0 // pred_check
    _
  $region23: #{tpu_custom_call.1} parent=0 // pred_check_branch
    %975 = sbr.rel (0) target = $region25
  $region24: #{tpu_custom_call.1} parent=0 // pred_region
    _
  $region25: #{tpu_custom_call.1} parent=0 // pred_fallthru
    _
  // Predicated region
  $region26: #{tpu_custom_call.1} parent=0 // pred_check
    _
  $region27: #{tpu_custom_call.1} parent=0 // pred_check_branch
    %977 = sbr.rel (0) target = $region29
  $region28: #{tpu_custom_call.1} parent=0 // pred_region
    _
  $region29: #{tpu_custom_call.1} parent=0 // pred_fallthru
    _

</llo_original>
